<compile_context>
chip_gen: v7x
topology: tpu7x:2x2x1
jax: 0.10.0
libtpu: 0.0.40
codegen_flags: <defaults>
</compile_context>

<pallas_src>
import functools

import jax
import jax.numpy as jnp
from jax.experimental import pallas as pl
from jax.experimental.pallas import tpu as pltpu

LANE = 128


def _dice_focal_sums_kernel(x_ref, t_ref, acc_ref, *, tile_rows,
                            tiles_per_shard, rows_valid, needs_mask):
    j = pl.program_id(1)

    @pl.when(j == 0)
    def _init():
        acc_ref[...] = jnp.zeros_like(acc_ref)

    x = x_ref[...].astype(jnp.float32)
    t = t_ref[...].astype(jnp.float32)

    if needs_mask:
        # Mask rows that lie past the end of the (rows, 128) array.  Use a
        # select (not a multiply) so unspecified out-of-bounds data (possibly
        # NaN) cannot leak into the sums.
        s = pl.program_id(0)
        base_row = (s * tiles_per_shard + j) * tile_rows
        row_ids = base_row + jax.lax.broadcasted_iota(jnp.int32, x.shape, 0)
        valid = row_ids < rows_valid
        x = jnp.where(valid, x, 0.0)
        t = jnp.where(valid, t, 0.0)

    # Binary cross-entropy per element with PyTorch's log clamp at -100.
    # (Also makes zero-padded elements contribute exactly 0 to every sum.)
    log_x = jnp.maximum(jnp.log(x), -100.0)
    log_1mx = jnp.maximum(jnp.log1p(-x), -100.0)
    bce = -(t * log_x + (1.0 - t) * log_1mx)

    folds = tile_rows // 8

    def fold(v):
        # (tile_rows, 128) -> sum of (8, 128) vregs: pure element-wise VPU adds.
        return jnp.sum(v.reshape(folds, 8, LANE), axis=0)

    acc_ref[0, 0] += fold(x * t)   # intersection
    acc_ref[0, 1] += fold(x)       # sum(inputs)
    acc_ref[0, 2] += fold(t)       # sum(targets)
    acc_ref[0, 3] += fold(bce)     # sum(BCE)


def dice_focal_loss(inputs: jax.Array, targets: jax.Array, *,
                    smooth: float = 1.0, alpha: float = 0.8,
                    gamma: float = 2.0, max_tile_rows: int = 2048,
                    num_shards: int = 2) -> jax.Array:
    assert inputs.shape == targets.shape, "inputs/targets shape mismatch"
    n = int(inputs.size)

    x_flat = inputs.reshape(-1)   # keep native dtype; cast happens in-kernel
    t_flat = targets.reshape(-1)

    # Sublane granule for the input dtypes (8 for 32-bit, 16 for 16-bit, ...).
    def _granule(dt):
        return max(8, 8 * (4 // max(1, jnp.dtype(dt).itemsize)))

    g = max(_granule(inputs.dtype), _granule(targets.dtype))

    # Pad only to a multiple of g*128 (zero padding is exact for all sums).
    chunk = g * LANE
    n_pad = ((n + chunk - 1) // chunk) * chunk
    if n_pad != n:
        x_flat = jnp.pad(x_flat, (0, n_pad - n))
        t_flat = jnp.pad(t_flat, (0, n_pad - n))

    rows = n_pad // LANE
    x2d = x_flat.reshape(rows, LANE)
    t2d = t_flat.reshape(rows, LANE)

    tile_rows = min(max_tile_rows, rows)
    tile_rows = max(g, (tile_rows // g) * g)       # multiple of the granule

    num_tiles = pl.cdiv(rows, tile_rows)
    shards = max(1, min(num_shards, num_tiles))
    tiles_per_shard = pl.cdiv(num_tiles, shards)
    needs_mask = (shards * tiles_per_shard * tile_rows != rows)

    kernel = functools.partial(
        _dice_focal_sums_kernel,
        tile_rows=tile_rows,
        tiles_per_shard=tiles_per_shard,
        rows_valid=rows,
        needs_mask=needs_mask,
    )

    def in_index(s, j):
        # Clamp so a (masked) overhang tile never DMAs fully out of bounds.
        return (jnp.minimum(s * tiles_per_shard + j, num_tiles - 1), 0)

    bytes_in = n * (jnp.dtype(inputs.dtype).itemsize
                    + jnp.dtype(targets.dtype).itemsize)
    cost = pl.CostEstimate(
        flops=12 * n,
        transcendentals=2 * n,
        bytes_accessed=bytes_in + shards * 4 * 8 * LANE * 4,
    )

    partials = pl.pallas_call(
        kernel,
        out_shape=jax.ShapeDtypeStruct((shards, 4, 8, LANE), jnp.float32),
        grid_spec=pltpu.PrefetchScalarGridSpec(
            num_scalar_prefetch=0,
            grid=(shards, tiles_per_shard),
            in_specs=[
                pl.BlockSpec((tile_rows, LANE), in_index),
                pl.BlockSpec((tile_rows, LANE), in_index),
            ],
            out_specs=pl.BlockSpec((1, 4, 8, LANE), lambda s, j: (s, 0, 0, 0)),
        ),
        compiler_params=pltpu.CompilerParams(
            dimension_semantics=("parallel", "arbitrary"),
        ),
        cost_estimate=cost,
    )(x2d, t2d)

    sums = jnp.sum(partials, axis=(0, 2, 3))   # (4,) lane-dense finalize
    intersection, sum_x, sum_t, bce_sum = sums[0], sums[1], sums[2], sums[3]

    # DiceLoss(smooth=1)
    dice = (2.0 * intersection + smooth) / (sum_x + sum_t + smooth)
    dice_loss = 1.0 - dice

    # FocalLoss(alpha=0.8, gamma=2) on mean BCE
    bce_mean = bce_sum / n
    bce_exp = jnp.exp(-bce_mean)
    focal_loss = alpha * (1.0 - bce_exp) ** gamma * bce_mean

    return dice_loss + focal_loss


def _reference(inputs, targets, smooth=1.0, alpha=0.8, gamma=2.0):
    x = inputs.astype(jnp.float32)
    t = targets.astype(jnp.float32)
    intersection = jnp.sum(x * t)
    dice = (2.0 * intersection + smooth) / (jnp.sum(x) + jnp.sum(t) + smooth)
    dice_loss = 1.0 - dice
    log_x = jnp.maximum(jnp.log(x), -100.0)
    log_1mx = jnp.maximum(jnp.log1p(-x), -100.0)
    bce = jnp.mean(-(t * log_x + (1.0 - t) * log_1mx))
    focal = alpha * (1.0 - jnp.exp(-bce)) ** gamma * bce
    return dice_loss + focal


if __name__ == "__main__":
    key = jax.random.PRNGKey(0)
    k1, k2, k3, k4 = jax.random.split(key, 4)

    # Case 1: NCHW segmentation-style tensors (defaults, single tile).
    shape = (2, 4, 16, 16)
    inputs = jax.random.uniform(k1, shape, dtype=jnp.float32)            # probabilities
    targets = (jax.random.uniform(k2, shape) > 0.5).astype(jnp.float32)  # binary targets

    out = jax.block_until_ready(dice_focal_loss(inputs, targets))
    expected = _reference(inputs, targets)
    assert jnp.allclose(out, expected, rtol=1e-4, atol=1e-5), (out, expected)

    # Case 2: ragged size exercising pad + in-kernel tail mask + 2-way sharding.
    shape2 = (1, 1, 48, 48)
    inputs2 = jax.random.uniform(k3, shape2, dtype=jnp.float32)
    targets2 = (jax.random.uniform(k4, shape2) > 0.5).astype(jnp.float32)
    out2 = jax.block_until_ready(
        dice_focal_loss(inputs2, targets2, max_tile_rows=16))
    expected2 = _reference(inputs2, targets2)
    assert jnp.allclose(out2, expected2, rtol=1e-4, atol=1e-5), (out2, expected2)

    print("KERNEL_OK")
</pallas_src>

<mosaic_0001>
module attributes {stable_mosaic.version = 11 : i64} {
  func.func @_dice_focal_sums_kernel(%arg0: i32, %arg1: i32, %arg2: memref<16x128xf32, #tpu.memory_space<vmem>>, %arg3: memref<16x128xf32, #tpu.memory_space<vmem>>, %arg4: memref<1x4x8x128xf32, #tpu.memory_space<vmem>>) attributes {dimension_semantics = [#tpu.dimension_semantics<parallel>, #tpu.dimension_semantics<arbitrary>], iteration_bounds = array<i64: 1, 1>, scalar_prefetch = 0 : i64, scratch_operands = 0 : i64, tpu.core_type = #tpu.core_type<tc>, window_params = [{transform_indices = @transform_0, window_bounds = array<i64: 16, 128>}, {transform_indices = @transform_1, window_bounds = array<i64: 16, 128>}, {transform_indices = @transform_2, window_bounds = array<i64: 1, 4, 8, 128>}]} {
    %c0_i32 = arith.constant 0 : i32
    %0 = arith.cmpi eq, %arg1, %c0_i32 : i32
    %1 = arith.extui %0 : i1 to i32
    %c0_i32_0 = arith.constant 0 : i32
    %2 = arith.cmpi ne, %1, %c0_i32_0 : i32
    scf.if %2 {
      %cst_41 = arith.constant 0.000000e+00 : f32
      %53 = vector.broadcast %cst_41 : f32 to vector<1x4x8x128xf32>
      %c0_42 = arith.constant 0 : index
      %c0_43 = arith.constant 0 : index
      %c0_44 = arith.constant 0 : index
      %c0_45 = arith.constant 0 : index
      %54 = vector.load %arg4[%c0_42, %c0_43, %c0_44, %c0_45] : memref<1x4x8x128xf32, #tpu.memory_space<vmem>>, vector<1x4x8x128xf32>
      tpu.vector_store %arg4[%c0_42, %c0_43, %c0_44, %c0_45], %53 {strides = array<i32>} : memref<1x4x8x128xf32, #tpu.memory_space<vmem>>, vector<1x4x8x128xf32>,
    } else {
    }
    %c0 = arith.constant 0 : index
    %c0_1 = arith.constant 0 : index
    %3 = vector.load %arg2[%c0, %c0_1] : memref<16x128xf32, #tpu.memory_space<vmem>>, vector<16x128xf32>
    %c0_2 = arith.constant 0 : index
    %c0_3 = arith.constant 0 : index
    %4 = vector.load %arg3[%c0_2, %c0_3] : memref<16x128xf32, #tpu.memory_space<vmem>>, vector<16x128xf32>
    %5 = math.log %3 : vector<16x128xf32>
    %cst = arith.constant -1.000000e+02 : f32
    %6 = vector.broadcast %cst : f32 to vector<16x128xf32>
    %7 = arith.maximumf %5, %6 : vector<16x128xf32>
    %cst_4 = arith.constant 0.000000e+00 : f32
    %8 = vector.broadcast %cst_4 : f32 to vector<16x128xf32>
    %9 = arith.subf %8, %3 : vector<16x128xf32>
    %10 = math.log1p %9 : vector<16x128xf32>
    %cst_5 = arith.constant -1.000000e+02 : f32
    %11 = vector.broadcast %cst_5 : f32 to vector<16x128xf32>
    %12 = arith.maximumf %10, %11 : vector<16x128xf32>
    %13 = arith.mulf %4, %7 : vector<16x128xf32>
    %cst_6 = arith.constant 1.000000e+00 : f32
    %14 = vector.broadcast %cst_6 : f32 to vector<16x128xf32>
    %15 = arith.subf %14, %4 : vector<16x128xf32>
    %16 = arith.mulf %15, %12 : vector<16x128xf32>
    %17 = arith.addf %13, %16 : vector<16x128xf32>
    %cst_7 = arith.constant 0.000000e+00 : f32
    %18 = vector.broadcast %cst_7 : f32 to vector<16x128xf32>
    %19 = arith.subf %18, %17 : vector<16x128xf32>
    %c0_8 = arith.constant 0 : index
    %c0_9 = arith.constant 0 : index
    %c0_10 = arith.constant 0 : index
    %c0_11 = arith.constant 0 : index
    %20 = vector.load %arg4[%c0_8, %c0_9, %c0_10, %c0_11] : memref<1x4x8x128xf32, #tpu.memory_space<vmem>>, vector<1x1x8x128xf32>
    %21 = vector.shape_cast %20 : vector<1x1x8x128xf32> to vector<8x128xf32>
    %22 = arith.mulf %3, %4 : vector<16x128xf32>
    %23 = vector.shape_cast %22 : vector<16x128xf32> to vector<2x8x128xf32>
    %cst_12 = arith.constant dense<0.000000e+00> : vector<8x128xf32>
    %24 = vector.multi_reduction <add>, %23, %cst_12 [0] : vector<2x8x128xf32> to vector<8x128xf32>
    %25 = arith.addf %21, %24 : vector<8x128xf32>
    %c0_13 = arith.constant 0 : index
    %c0_14 = arith.constant 0 : index
    %c0_15 = arith.constant 0 : index
    %c0_16 = arith.constant 0 : index
    %26 = vector.load %arg4[%c0_13, %c0_14, %c0_15, %c0_16] : memref<1x4x8x128xf32, #tpu.memory_space<vmem>>, vector<1x1x8x128xf32>
    %27 = vector.shape_cast %26 : vector<1x1x8x128xf32> to vector<8x128xf32>
    %28 = vector.shape_cast %25 : vector<8x128xf32> to vector<1x1x8x128xf32>
    tpu.vector_store %arg4[%c0_13, %c0_14, %c0_15, %c0_16], %28 {strides = array<i32>} : memref<1x4x8x128xf32, #tpu.memory_space<vmem>>, vector<1x1x8x128xf32>,
    %c0_17 = arith.constant 0 : index
    %c1 = arith.constant 1 : index
    %c0_18 = arith.constant 0 : index
    %c0_19 = arith.constant 0 : index
    %29 = vector.load %arg4[%c0_17, %c1, %c0_18, %c0_19] : memref<1x4x8x128xf32, #tpu.memory_space<vmem>>, vector<1x1x8x128xf32>
    %30 = vector.shape_cast %29 : vector<1x1x8x128xf32> to vector<8x128xf32>
    %31 = vector.shape_cast %3 : vector<16x128xf32> to vector<2x8x128xf32>
    %cst_20 = arith.constant dense<0.000000e+00> : vector<8x128xf32>
    %32 = vector.multi_reduction <add>, %31, %cst_20 [0] : vector<2x8x128xf32> to vector<8x128xf32>
    %33 = arith.addf %30, %32 : vector<8x128xf32>
    %c0_21 = arith.constant 0 : index
    %c1_22 = arith.constant 1 : index
    %c0_23 = arith.constant 0 : index
    %c0_24 = arith.constant 0 : index
    %34 = vector.load %arg4[%c0_21, %c1_22, %c0_23, %c0_24] : memref<1x4x8x128xf32, #tpu.memory_space<vmem>>, vector<1x1x8x128xf32>
    %35 = vector.shape_cast %34 : vector<1x1x8x128xf32> to vector<8x128xf32>
    %36 = vector.shape_cast %33 : vector<8x128xf32> to vector<1x1x8x128xf32>
    tpu.vector_store %arg4[%c0_21, %c1_22, %c0_23, %c0_24], %36 {strides = array<i32>} : memref<1x4x8x128xf32, #tpu.memory_space<vmem>>, vector<1x1x8x128xf32>,
    %c0_25 = arith.constant 0 : index
    %c2 = arith.constant 2 : index
    %c0_26 = arith.constant 0 : index
    %c0_27 = arith.constant 0 : index
    %37 = vector.load %arg4[%c0_25, %c2, %c0_26, %c0_27] : memref<1x4x8x128xf32, #tpu.memory_space<vmem>>, vector<1x1x8x128xf32>
    %38 = vector.shape_cast %37 : vector<1x1x8x128xf32> to vector<8x128xf32>
    %39 = vector.shape_cast %4 : vector<16x128xf32> to vector<2x8x128xf32>
    %cst_28 = arith.constant dense<0.000000e+00> : vector<8x128xf32>
    %40 = vector.multi_reduction <add>, %39, %cst_28 [0] : vector<2x8x128xf32> to vector<8x128xf32>
    %41 = arith.addf %38, %40 : vector<8x128xf32>
    %c0_29 = arith.constant 0 : index
    %c2_30 = arith.constant 2 : index
    %c0_31 = arith.constant 0 : index
    %c0_32 = arith.constant 0 : index
    %42 = vector.load %arg4[%c0_29, %c2_30, %c0_31, %c0_32] : memref<1x4x8x128xf32, #tpu.memory_space<vmem>>, vector<1x1x8x128xf32>
    %43 = vector.shape_cast %42 : vector<1x1x8x128xf32> to vector<8x128xf32>
    %44 = vector.shape_cast %41 : vector<8x128xf32> to vector<1x1x8x128xf32>
    tpu.vector_store %arg4[%c0_29, %c2_30, %c0_31, %c0_32], %44 {strides = array<i32>} : memref<1x4x8x128xf32, #tpu.memory_space<vmem>>, vector<1x1x8x128xf32>,
    %c0_33 = arith.constant 0 : index
    %c3 = arith.constant 3 : index
    %c0_34 = arith.constant 0 : index
    %c0_35 = arith.constant 0 : index
    %45 = vector.load %arg4[%c0_33, %c3, %c0_34, %c0_35] : memref<1x4x8x128xf32, #tpu.memory_space<vmem>>, vector<1x1x8x128xf32>
    %46 = vector.shape_cast %45 : vector<1x1x8x128xf32> to vector<8x128xf32>
    %47 = vector.shape_cast %19 : vector<16x128xf32> to vector<2x8x128xf32>
    %cst_36 = arith.constant dense<0.000000e+00> : vector<8x128xf32>
    %48 = vector.multi_reduction <add>, %47, %cst_36 [0] : vector<2x8x128xf32> to vector<8x128xf32>
    %49 = arith.addf %46, %48 : vector<8x128xf32>
    %c0_37 = arith.constant 0 : index
    %c3_38 = arith.constant 3 : index
    %c0_39 = arith.constant 0 : index
    %c0_40 = arith.constant 0 : index
    %50 = vector.load %arg4[%c0_37, %c3_38, %c0_39, %c0_40] : memref<1x4x8x128xf32, #tpu.memory_space<vmem>>, vector<1x1x8x128xf32>
    %51 = vector.shape_cast %50 : vector<1x1x8x128xf32> to vector<8x128xf32>
    %52 = vector.shape_cast %49 : vector<8x128xf32> to vector<1x1x8x128xf32>
    tpu.vector_store %arg4[%c0_37, %c3_38, %c0_39, %c0_40], %52 {strides = array<i32>} : memref<1x4x8x128xf32, #tpu.memory_space<vmem>>, vector<1x1x8x128xf32>,
    return
  }
  func.func @transform_0(%arg0: i32, %arg1: i32) -> (i32, i32) {
    %c1_i32 = arith.constant 1 : i32
    %0 = arith.muli %arg0, %c1_i32 : i32
    %1 = arith.addi %0, %arg1 : i32
    %c0_i32 = arith.constant 0 : i32
    %2 = arith.minsi %1, %c0_i32 : i32
    %c0_i32_0 = arith.constant 0 : i32
    %c0_i32_1 = arith.constant 0 : i32
    return %2, %c0_i32_0 : i32, i32
  }
  func.func @transform_1(%arg0: i32, %arg1: i32) -> (i32, i32) {
    %c1_i32 = arith.constant 1 : i32
    %0 = arith.muli %arg0, %c1_i32 : i32
    %1 = arith.addi %0, %arg1 : i32
    %c0_i32 = arith.constant 0 : i32
    %2 = arith.minsi %1, %c0_i32 : i32
    %c0_i32_0 = arith.constant 0 : i32
    %c0_i32_1 = arith.constant 0 : i32
    return %2, %c0_i32_0 : i32, i32
  }
  func.func @transform_2(%arg0: i32, %arg1: i32) -> (i32, i32, i32, i32) {
    %c0_i32 = arith.constant 0 : i32
    %c0_i32_0 = arith.constant 0 : i32
    %c0_i32_1 = arith.constant 0 : i32
    %c0_i32_2 = arith.constant 0 : i32
    return %arg0, %c0_i32, %c0_i32_0, %c0_i32_1 : i32, i32, i32, i32
  }
}

</mosaic_0001>

<llo_original>
// kernel: tpu_custom_call.1
$region0: #{tpu_custom_call.1}
  #allocation0 [shape = 'u32[]', space=smem, size = 0x4, offset = 0x4, fixed_abs, tag = 'smem constant byte address 0x4 - core index']
  #allocation1 [shape = 'u32[144,128]{1,0:T(1,128)}', space=vmem, size = 0x12000, scoped, tag = 'internal scratch']
  %s0 = inlined_call_operand.hbm [shape: f32[16,128], index: 0, kind: input, shape index: {}]
  %s1 = inlined_call_operand.hbm [shape: f32[16,128], index: 1, kind: input, shape index: {}]
  %s2 = inlined_call_operand.hbm [shape: f32[1,4,8,128], index: 2, kind: output, shape index: {}]
  %s3 = sld [smem:[#allocation0]]
  $region30: #{tpu_custom_call.1} parent=0
    _
  %s5 = ssub.s32 1, %s3
  %s6 = scalar_select 0, %s5, %s3
  $region1: #{tpu_custom_call.1} parent=0
    #allocation2 [shape = 'u8[8192]{0}', space=vmem, size = 0x2000, scoped, tag = 'input window, operand 0, single buffered']
    #allocation3 [shape = 's32[1]{0}', space=sflag, size = 0x4, scoped, tag = 'scoped memory for tpu_custom_call.1']
    #allocation4 [shape = 's32[1]{0}', space=sflag, size = 0x4, scoped, tag = 'scoped memory for tpu_custom_call.1']
    #allocation5 [shape = 'u8[8192]{0}', space=vmem, size = 0x2000, scoped, tag = 'input window, operand 1, single buffered']
    #allocation6 [shape = 's32[1]{0}', space=sflag, size = 0x4, scoped, tag = 'scoped memory for tpu_custom_call.1']
    #allocation7 [shape = 'u8[16384]{0}', space=vmem, size = 0x4000, scoped, tag = 'output window, operand 0, single buffered']
    %7 = vsyncpa [#allocation3], 0
    %8 = vsyncpa [#allocation6], 0
    %9 = vsyncpa [#allocation4], 0
    // Predicated region
    $region2: #{tpu_custom_call.1} parent=1 // pred_check
      _
    $region3: #{tpu_custom_call.1} parent=1 // pred_check_branch
      %11 = sbr.rel (0) target = $region5
    $region4: #{tpu_custom_call.1} parent=1 // pred_region
      %s12 = sadd.s32 0, 0
      %p13 = scmp.lt.s32.totalorder %s12, 0
      %s14 = scalar_select %p13, %s12, 0
      %s15 = smul.u32 2, %s14
      %s17 = ssub.s32 256, 256
      %18 = vsyncadd [#allocation3], %s17
      %s19 = smul.addr %s15, 128
      %s20 = scalar_lea.hbm %s0, %s19
      %s21 = sshll.u32 [#allocation2], 4
      %s22 = int_to_ptr.vmem [resolvable:$true] %s21
      %27 = dma.hbm_to_vmem [thread:$0]  %s20, 256, %s22, [#allocation3], 128, 128, 8
    $region5: #{tpu_custom_call.1} parent=1 // pred_fallthru
      _
    // Predicated region
    $region6: #{tpu_custom_call.1} parent=1 // pred_check
      _
    $region7: #{tpu_custom_call.1} parent=1 // pred_check_branch
      %29 = sbr.rel (0) target = $region9
    $region8: #{tpu_custom_call.1} parent=1 // pred_region
      %s30 = sadd.s32 0, 0
      %p31 = scmp.lt.s32.totalorder %s30, 0
      %s32 = scalar_select %p31, %s30, 0
      %s33 = smul.u32 2, %s32
      %s35 = ssub.s32 256, 256
      %36 = vsyncadd [#allocation6], %s35
      %s37 = smul.addr %s33, 128
      %s38 = scalar_lea.hbm %s1, %s37
      %s39 = sshll.u32 [#allocation5], 4
      %s40 = int_to_ptr.vmem [resolvable:$true] %s39
      %45 = dma.hbm_to_vmem [thread:$0]  %s38, 256, %s40, [#allocation6], 128, 128, 8
    $region9: #{tpu_custom_call.1} parent=1 // pred_fallthru
      _
    // Predicated region
    $region10: #{tpu_custom_call.1} parent=1 // pred_check
      _
    $region11: #{tpu_custom_call.1} parent=1 // pred_check_branch
      %47 = sbr.rel (0) target = $region13
    $region12: #{tpu_custom_call.1} parent=1 // pred_region
      %48 = dma.done [#allocation3], 256
    $region13: #{tpu_custom_call.1} parent=1 // pred_fallthru
      _
    // Predicated region
    $region14: #{tpu_custom_call.1} parent=1 // pred_check
      _
    $region15: #{tpu_custom_call.1} parent=1 // pred_check_branch
      %50 = sbr.rel (0) target = $region17
    $region16: #{tpu_custom_call.1} parent=1 // pred_region
      %51 = dma.done [#allocation6], 256
    $region17: #{tpu_custom_call.1} parent=1 // pred_fallthru
      _
    %s52 = sadd.s32 0, 0
    %p53 = scmp.lt.s32.totalorder %s52, 0
    %s54 = scalar_select %p53, %s52, 0
    %s55 = smul.u32 2, %s54
    %s56 = sadd.s32 0, 0
    %p57 = scmp.lt.s32.totalorder %s56, 0
    %s58 = scalar_select %p57, %s56, 0
    %s59 = smul.u32 2, %s58
    %p60 = scmp.eq.s32.totalorder 0, 0
    // Predicated region
    $region18: #{tpu_custom_call.1} parent=1 // pred_check
      %p61 = pneg %p60
    $region19: #{tpu_custom_call.1} parent=1 // pred_check_branch
      %63 = sbr.rel (%p61) target = $region21
    $region20: #{tpu_custom_call.1} parent=1 // pred_region
      %64 = vst [vmem:[#allocation7] sm:$0xff] 0.0
      %65 = vst [vmem:[#allocation7 + $0x8] sm:$0xff] 0.0
      %66 = vst [vmem:[#allocation7 + $0x10] sm:$0xff] 0.0
      %67 = vst [vmem:[#allocation7 + $0x18] sm:$0xff] 0.0
    $region21: #{tpu_custom_call.1} parent=1 // pred_fallthru
      _
    %v68 = vld [vmem:[#allocation2] sm:$0xff]
    %v69 = vld [vmem:[#allocation2 + $0x8] sm:$0xff]
    %v70 = vld [vmem:[#allocation5] sm:$0xff]
    %v71 = vld [vmem:[#allocation5 + $0x8] sm:$0xff]
    %v72 = vlog2.pop %v68
    %v73 = vmul.f32 %v72, 0.6931472
    %v74 = vlog2.pop %v69
    %v75 = vmul.f32 %v74, 0.6931472
    %v76 = vmax.f32 %v73, -100.0
    %v77 = vmax.f32 %v75, -100.0
    %v78 = vsub.f32 0.0, %v68
    %v79 = vsub.f32 0.0, %v69
    %v80 = vadd.f32 %v78, 1.0
    %v81 = vlog2.pop %v80
    %v82 = vmul.f32 %v81, 0.6931472
    %v83 = vmul.f32 -0.5, %v78
    %v84 = vadd.f32 %v83, 1.0
    %v85 = vmul.f32 %v84, %v78
    %v86 = vand.u32 2147483647, %v78
    %vm87 = vcmp.lt.f32.partialorder %v86, 0.0004427343
    %v88 = vsel %vm87, %v85, %v82
    %v89 = vadd.f32 %v79, 1.0
    %v90 = vlog2.pop %v89
    %v91 = vmul.f32 %v90, 0.6931472
    %v92 = vmul.f32 -0.5, %v79
    %v93 = vadd.f32 %v92, 1.0
    %v94 = vmul.f32 %v93, %v79
    %v95 = vand.u32 2147483647, %v79
    %vm96 = vcmp.lt.f32.partialorder %v95, 0.0004427343
    %v97 = vsel %vm96, %v94, %v91
    %v98 = vmax.f32 %v88, -100.0
    %v99 = vmax.f32 %v97, -100.0
    %v100 = vmul.f32 %v70, %v76
    %v101 = vmul.f32 %v71, %v77
    %v102 = vsub.f32 1.0, %v70
    %v103 = vsub.f32 1.0, %v71
    %v104 = vmul.f32 %v102, %v98
    %v105 = vmul.f32 %v103, %v99
    %v106 = vadd.f32 %v100, %v104
    %v107 = vadd.f32 %v101, %v105
    %v108 = vsub.f32 0.0, %v106
    %v109 = vsub.f32 0.0, %v107
    %v110 = vld [vmem:[#allocation7] sm:$0xff]
    %v111 = vmul.f32 %v68, %v70
    %v112 = vmul.f32 %v69, %v71
    %v113 = vadd.f32 %v111, %v112
    %v114 = vadd.f32 %v110, %v113
    %115 = vst [vmem:[#allocation7] sm:$0xff] %v114
    %s116 = scalar_lea.vmem [#allocation7], 8
    %v117 = vld [vmem:[%s116] sm:$0xff]
    %v118 = vadd.f32 %v68, %v69
    %v119 = vadd.f32 %v117, %v118
    %120 = vst [vmem:[%s116] sm:$0xff] %v119
    %s121 = scalar_lea.vmem [#allocation7], 16
    %v122 = vld [vmem:[%s121] sm:$0xff]
    %v123 = vadd.f32 %v70, %v71
    %v124 = vadd.f32 %v122, %v123
    %125 = vst [vmem:[%s121] sm:$0xff] %v124
    %s126 = scalar_lea.vmem [#allocation7], 24
    %v127 = vld [vmem:[%s126] sm:$0xff]
    %v128 = vadd.f32 %v108, %v109
    %v129 = vadd.f32 %v127, %v128
    %130 = vst [vmem:[%s126] sm:$0xff] %v129
    // Predicated region
    $region22: #{tpu_custom_call.1} parent=1 // pred_check
      _
    $region23: #{tpu_custom_call.1} parent=1 // pred_check_branch
      %132 = sbr.rel (0) target = $region25
    $region24: #{tpu_custom_call.1} parent=1 // pred_region
      %s134 = ssub.s32 512, 512
      %135 = vsyncadd [#allocation4], %s134
      %s136 = sshll.u32 [#allocation7], 4
      %s137 = int_to_ptr.vmem [resolvable:$true] %s136
      %142 = dma.vmem_to_hbm [thread:$0]  %s137, 512, %s2, [#allocation4], 128, 128, 8
    $region25: #{tpu_custom_call.1} parent=1 // pred_fallthru
      _
    // Predicated region
    $region26: #{tpu_custom_call.1} parent=1 // pred_check
      _
    $region27: #{tpu_custom_call.1} parent=1 // pred_check_branch
      %144 = sbr.rel (0) target = $region29
    $region28: #{tpu_custom_call.1} parent=1 // pred_region
      %145 = dma.done [#allocation4], 512
    $region29: #{tpu_custom_call.1} parent=1 // pred_fallthru
      _
    %146 = vsyncpa [#allocation3], 1
    %147 = vsyncpa [#allocation6], 1
    %148 = vsyncpa [#allocation4], 1

</llo_original>
